<compile_context>
chip_gen: v7x
topology: tpu7x:2x2x1
jax: 0.10.0
libtpu: 0.0.40
codegen_flags: <defaults>
</compile_context>

<pallas_src>
import functools

import jax
import jax.numpy as jnp
from jax import lax
from jax.experimental import pallas as pl
from jax.experimental.pallas import tpu as pltpu

_LANES = 128


def _masked_mse_kernel(pred_ref, tgt_ref, loss_sum_ref, mask_sum_ref, *,
                       n_valid, tile_rows, n_inner):
    """Accumulate per-lane partial sums of masked squared error and mask count."""
    i = pl.program_id(1)  # inner streaming ("arbitrary") axis

    @pl.when(i == 0)
    def _init():
        loss_sum_ref[...] = jnp.zeros_like(loss_sum_ref)
        mask_sum_ref[...] = jnp.zeros_like(mask_sum_ref)

    t = tgt_ref[...].astype(jnp.float32)
    o = pred_ref[...].astype(jnp.float32)

    nz = t != 0.0
    diff = t - o
    sq = diff * diff

    def _accumulate(loss, mask_f):
        # Sublane-only reduction per step; cross-lane reduce happens once in
        # the wrapper on the (n_par, 1, 128) partials.
        loss_sum_ref[...] += jnp.sum(loss, axis=0, keepdims=True).reshape(1, 1, _LANES)
        mask_sum_ref[...] += jnp.sum(mask_f, axis=0, keepdims=True).reshape(1, 1, _LANES)

    # Which flat rows of the [R, 128] slab this grid step covers.
    blk = pl.program_id(0) * n_inner + i
    full_rows = n_valid // _LANES          # rows entirely inside the real data
    rem = n_valid % _LANES

    # FAST path (overwhelmingly common): whole tile lies inside the valid
    # element range -> no iota / bounds work at all.
    tile_all_valid = (blk + 1) * tile_rows <= full_rows

    @pl.when(tile_all_valid)
    def _fast():
        mask_f = nz.astype(jnp.float32)
        _accumulate(sq * mask_f, mask_f)

    # SLOW path: at most one tile per core (ragged tail / padded boundary /
    # clamped overshoot block of an uneven megacore split) builds a per-element
    # validity mask so the wrapper never has to materialize a padded copy.
    @pl.when(jnp.logical_not(tile_all_valid))
    def _tail():
        row = lax.broadcasted_iota(jnp.int32, t.shape, 0)
        grow = blk * tile_rows + row
        if rem == 0:
            valid = grow < full_rows
        else:
            lane = lax.broadcasted_iota(jnp.int32, t.shape, 1)
            valid = (grow < full_rows) | ((grow == full_rows) & (lane < rem))
        keep = nz & valid
        mask_f = keep.astype(jnp.float32)
        _accumulate(jnp.where(keep, sq, 0.0), mask_f)


def masked_mse(output, target, *, tile_rows=4096):
    """loss.sum() / (mask.sum() + 1e-15) with mask = (target != 0)."""
    assert output.shape == target.shape
    n = int(output.size)

    # Lane-dense [R, 128] view of the flat data. When n % 128 == 0 (typical for
    # NCHW image tensors) this is a free reshape of the contiguous array;
    # otherwise only the small lane remainder is padded (padded values are
    # ignored by the in-kernel validity mask anyway).
    pad = (-n) % _LANES

    def _to_2d(x):
        flat = x.reshape(-1)
        if pad:
            flat = jnp.pad(flat, (0, pad))
        return flat.reshape(-1, _LANES)

    out2d = _to_2d(output)
    tgt2d = _to_2d(target)
    rows = out2d.shape[0]

    # Effective tile: as large as requested, but never (much) larger than the
    # array. Sublane alignment depends on input element width (packing tiles).
    itemsize_in = min(jnp.dtype(output.dtype).itemsize,
                      jnp.dtype(target.dtype).itemsize)
    align = max(8, 32 // max(1, itemsize_in))
    tile_eff = min(int(tile_rows), ((rows + align - 1) // align) * align)
    tile_eff = max(align, (tile_eff // align) * align)
    num_blocks = pl.cdiv(rows, tile_eff)

    # Leading "parallel" axis: v7x shards it across its 2 TensorCores; on
    # single-core chips it is just an outer loop of size <= 2.
    n_par = 2 if num_blocks >= 2 else 1
    n_inner = pl.cdiv(num_blocks, n_par)

    def in_map(c, i):
        # Clamp so the (rare) overshoot block of an uneven split stays
        # in-bounds; its contribution is zeroed by the in-kernel validity mask.
        return (jnp.minimum(c * n_inner + i, num_blocks - 1), 0)

    def out_map(c, i):
        return (c, 0, 0)

    # Only raise the scoped-VMEM limit if a big user-chosen tile would exceed
    # the smallest default (v5e: 16 MiB). 2 inputs x 2 pipeline buffers.
    per_step_bytes = tile_eff * _LANES * (jnp.dtype(output.dtype).itemsize
                                          + jnp.dtype(target.dtype).itemsize)
    vmem_needed = 2 * per_step_bytes + (2 << 20)
    vmem_limit = int(vmem_needed) if vmem_needed > (16 << 20) else None

    kernel = functools.partial(_masked_mse_kernel, n_valid=n,
                               tile_rows=tile_eff, n_inner=n_inner)

    loss_part, mask_part = pl.pallas_call(
        kernel,
        out_shape=(
            jax.ShapeDtypeStruct((n_par, 1, _LANES), jnp.float32),
            jax.ShapeDtypeStruct((n_par, 1, _LANES), jnp.float32),
        ),
        grid_spec=pltpu.PrefetchScalarGridSpec(
            num_scalar_prefetch=0,
            grid=(n_par, n_inner),
            in_specs=[
                pl.BlockSpec((tile_eff, _LANES), in_map),
                pl.BlockSpec((tile_eff, _LANES), in_map),
            ],
            out_specs=[
                pl.BlockSpec((1, 1, _LANES), out_map),
                pl.BlockSpec((1, 1, _LANES), out_map),
            ],
        ),
        compiler_params=pltpu.CompilerParams(
            dimension_semantics=("parallel", "arbitrary"),
            vmem_limit_bytes=vmem_limit,
        ),
    )(out2d, tgt2d)

    loss_sum = jnp.sum(loss_part)
    mask_sum = jnp.sum(mask_part)
    return (loss_sum / (mask_sum + 1e-15)).astype(jnp.float32)


def masked_mse_ref(output, target):
    t = target.astype(jnp.float32)
    o = output.astype(jnp.float32)
    mask = (t != 0.0).astype(jnp.float32)
    loss = (t - o) ** 2 * mask
    return loss.sum() / (mask.sum() + 1e-15)


if __name__ == "__main__":
    key = jax.random.PRNGKey(0)
    k1, k2, k3 = jax.random.split(key, 3)

    B, C, H, W = 2, 4, 16, 16  # NCHW, matching the PyTorch module's usage
    output = jax.random.normal(k1, (B, C, H, W), dtype=jnp.float32)
    target = jax.random.normal(k2, (B, C, H, W), dtype=jnp.float32)
    # Sprinkle exact zeros into the target so the mask is non-trivial.
    zero_mask = jax.random.bernoulli(k3, p=0.3, shape=(B, C, H, W))
    target = jnp.where(zero_mask, 0.0, target)

    got = jax.block_until_ready(masked_mse(output, target))
    want = jax.block_until_ready(masked_mse_ref(output, target))

    assert jnp.allclose(got, want, rtol=1e-5, atol=1e-6), (got, want)
    print("KERNEL_OK")
</pallas_src>

<mosaic_0001>
module attributes {stable_mosaic.version = 11 : i64} {
  func.func @_masked_mse_kernel(%arg0: i32, %arg1: i32, %arg2: memref<16x128xf32, #tpu.memory_space<vmem>>, %arg3: memref<16x128xf32, #tpu.memory_space<vmem>>, %arg4: memref<1x1x128xf32, #tpu.memory_space<vmem>>, %arg5: memref<1x1x128xf32, #tpu.memory_space<vmem>>) attributes {dimension_semantics = [#tpu.dimension_semantics<parallel>, #tpu.dimension_semantics<arbitrary>], iteration_bounds = array<i64: 1, 1>, scalar_prefetch = 0 : i64, scratch_operands = 0 : i64, tpu.core_type = #tpu.core_type<tc>, window_params = [{transform_indices = @transform_0, window_bounds = array<i64: 16, 128>}, {transform_indices = @transform_1, window_bounds = array<i64: 16, 128>}, {transform_indices = @transform_2, window_bounds = array<i64: 1, 1, 128>}, {transform_indices = @transform_3, window_bounds = array<i64: 1, 1, 128>}]} {
    %c0_i32 = arith.constant 0 : i32
    %0 = arith.cmpi eq, %arg1, %c0_i32 : i32
    %1 = arith.extui %0 : i1 to i32
    %c0_i32_0 = arith.constant 0 : i32
    %2 = arith.cmpi ne, %1, %c0_i32_0 : i32
    scf.if %2 {
      %cst_8 = arith.constant 0.000000e+00 : f32
      %19 = vector.broadcast %cst_8 : f32 to vector<1x1x128xf32>
      %c0_9 = arith.constant 0 : index
      %c0_10 = arith.constant 0 : index
      %c0_11 = arith.constant 0 : index
      %20 = vector.load %arg4[%c0_9, %c0_10, %c0_11] : memref<1x1x128xf32, #tpu.memory_space<vmem>>, vector<1x1x128xf32>
      tpu.vector_store %arg4[%c0_9, %c0_10, %c0_11], %19 {strides = array<i32>} : memref<1x1x128xf32, #tpu.memory_space<vmem>>, vector<1x1x128xf32>,
      %cst_12 = arith.constant 0.000000e+00 : f32
      %21 = vector.broadcast %cst_12 : f32 to vector<1x1x128xf32>
      %c0_13 = arith.constant 0 : index
      %c0_14 = arith.constant 0 : index
      %c0_15 = arith.constant 0 : index
      %22 = vector.load %arg5[%c0_13, %c0_14, %c0_15] : memref<1x1x128xf32, #tpu.memory_space<vmem>>, vector<1x1x128xf32>
      tpu.vector_store %arg5[%c0_13, %c0_14, %c0_15], %21 {strides = array<i32>} : memref<1x1x128xf32, #tpu.memory_space<vmem>>, vector<1x1x128xf32>,
    } else {
    }
    %c0 = arith.constant 0 : index
    %c0_1 = arith.constant 0 : index
    %3 = vector.load %arg3[%c0, %c0_1] : memref<16x128xf32, #tpu.memory_space<vmem>>, vector<16x128xf32>
    %c0_2 = arith.constant 0 : index
    %c0_3 = arith.constant 0 : index
    %4 = vector.load %arg2[%c0_2, %c0_3] : memref<16x128xf32, #tpu.memory_space<vmem>>, vector<16x128xf32>
    %cst = arith.constant 0.000000e+00 : f32
    %5 = vector.broadcast %cst : f32 to vector<16x128xf32>
    %6 = arith.cmpf one, %3, %5 : vector<16x128xf32>
    %7 = arith.subf %3, %4 : vector<16x128xf32>
    %8 = arith.mulf %7, %7 : vector<16x128xf32>
    %c1_i32 = arith.constant 1 : i32
    %9 = arith.muli %arg0, %c1_i32 : i32
    %10 = arith.addi %9, %arg1 : i32
    %c1_i32_4 = arith.constant 1 : i32
    %11 = arith.addi %10, %c1_i32_4 : i32
    %c16_i32 = arith.constant 16 : i32
    %12 = arith.muli %11, %c16_i32 : i32
    %c16_i32_5 = arith.constant 16 : i32
    %13 = arith.cmpi sle, %12, %c16_i32_5 : i32
    %14 = arith.extui %13 : i1 to i32
    %c0_i32_6 = arith.constant 0 : i32
    %15 = arith.cmpi ne, %14, %c0_i32_6 : i32
    scf.if %15 {
      %19 = arith.extui %6 : vector<16x128xi1> to vector<16x128xi32>
      %20 = arith.sitofp %19 : vector<16x128xi32> to vector<16x128xf32>
      %21 = arith.mulf %8, %20 : vector<16x128xf32>
      %c0_8 = arith.constant 0 : index
      %c0_9 = arith.constant 0 : index
      %c0_10 = arith.constant 0 : index
      %22 = vector.load %arg4[%c0_8, %c0_9, %c0_10] : memref<1x1x128xf32, #tpu.memory_space<vmem>>, vector<1x1x128xf32>
      %cst_11 = arith.constant dense<0.000000e+00> : vector<128xf32>
      %23 = vector.multi_reduction <add>, %21, %cst_11 [0] : vector<16x128xf32> to vector<128xf32>
      %24 = vector.shape_cast %23 : vector<128xf32> to vector<1x128xf32>
      %25 = vector.shape_cast %24 : vector<1x128xf32> to vector<1x1x128xf32>
      %26 = arith.addf %22, %25 : vector<1x1x128xf32>
      %c0_12 = arith.constant 0 : index
      %c0_13 = arith.constant 0 : index
      %c0_14 = arith.constant 0 : index
      %27 = vector.load %arg4[%c0_12, %c0_13, %c0_14] : memref<1x1x128xf32, #tpu.memory_space<vmem>>, vector<1x1x128xf32>
      tpu.vector_store %arg4[%c0_12, %c0_13, %c0_14], %26 {strides = array<i32>} : memref<1x1x128xf32, #tpu.memory_space<vmem>>, vector<1x1x128xf32>,
      %c0_15 = arith.constant 0 : index
      %c0_16 = arith.constant 0 : index
      %c0_17 = arith.constant 0 : index
      %28 = vector.load %arg5[%c0_15, %c0_16, %c0_17] : memref<1x1x128xf32, #tpu.memory_space<vmem>>, vector<1x1x128xf32>
      %cst_18 = arith.constant dense<0.000000e+00> : vector<128xf32>
      %29 = vector.multi_reduction <add>, %20, %cst_18 [0] : vector<16x128xf32> to vector<128xf32>
      %30 = vector.shape_cast %29 : vector<128xf32> to vector<1x128xf32>
      %31 = vector.shape_cast %30 : vector<1x128xf32> to vector<1x1x128xf32>
      %32 = arith.addf %28, %31 : vector<1x1x128xf32>
      %c0_19 = arith.constant 0 : index
      %c0_20 = arith.constant 0 : index
      %c0_21 = arith.constant 0 : index
      %33 = vector.load %arg5[%c0_19, %c0_20, %c0_21] : memref<1x1x128xf32, #tpu.memory_space<vmem>>, vector<1x1x128xf32>
      tpu.vector_store %arg5[%c0_19, %c0_20, %c0_21], %32 {strides = array<i32>} : memref<1x1x128xf32, #tpu.memory_space<vmem>>, vector<1x1x128xf32>,
    } else {
    }
    %true = arith.constant true
    %16 = arith.xori %13, %true : i1
    %17 = arith.extui %16 : i1 to i32
    %c0_i32_7 = arith.constant 0 : i32
    %18 = arith.cmpi ne, %17, %c0_i32_7 : i32
    scf.if %18 {
      %19 = tpu.iota {dimensions = array<i32: 0>} : vector<16x128xi32>
      %c16_i32_8 = arith.constant 16 : i32
      %20 = arith.muli %10, %c16_i32_8 : i32
      %21 = vector.broadcast %20 : i32 to vector<16x128xi32>
      %22 = arith.addi %21, %19 : vector<16x128xi32>
      %c16_i32_9 = arith.constant 16 : i32
      %23 = vector.broadcast %c16_i32_9 : i32 to vector<16x128xi32>
      %24 = arith.cmpi slt, %22, %23 : vector<16x128xi32>
      %25 = arith.andi %6, %24 : vector<16x128xi1>
      %26 = arith.extui %25 : vector<16x128xi1> to vector<16x128xi32>
      %27 = arith.sitofp %26 : vector<16x128xi32> to vector<16x128xf32>
      %cst_10 = arith.constant 0.000000e+00 : f32
      %28 = vector.broadcast %cst_10 : f32 to vector<16x128xf32>
      %29 = arith.select %25, %8, %28 : vector<16x128xi1>, vector<16x128xf32>
      %c0_11 = arith.constant 0 : index
      %c0_12 = arith.constant 0 : index
      %c0_13 = arith.constant 0 : index
      %30 = vector.load %arg4[%c0_11, %c0_12, %c0_13] : memref<1x1x128xf32, #tpu.memory_space<vmem>>, vector<1x1x128xf32>
      %cst_14 = arith.constant dense<0.000000e+00> : vector<128xf32>
      %31 = vector.multi_reduction <add>, %29, %cst_14 [0] : vector<16x128xf32> to vector<128xf32>
      %32 = vector.shape_cast %31 : vector<128xf32> to vector<1x128xf32>
      %33 = vector.shape_cast %32 : vector<1x128xf32> to vector<1x1x128xf32>
      %34 = arith.addf %30, %33 : vector<1x1x128xf32>
      %c0_15 = arith.constant 0 : index
      %c0_16 = arith.constant 0 : index
      %c0_17 = arith.constant 0 : index
      %35 = vector.load %arg4[%c0_15, %c0_16, %c0_17] : memref<1x1x128xf32, #tpu.memory_space<vmem>>, vector<1x1x128xf32>
      tpu.vector_store %arg4[%c0_15, %c0_16, %c0_17], %34 {strides = array<i32>} : memref<1x1x128xf32, #tpu.memory_space<vmem>>, vector<1x1x128xf32>,
      %c0_18 = arith.constant 0 : index
      %c0_19 = arith.constant 0 : index
      %c0_20 = arith.constant 0 : index
      %36 = vector.load %arg5[%c0_18, %c0_19, %c0_20] : memref<1x1x128xf32, #tpu.memory_space<vmem>>, vector<1x1x128xf32>
      %cst_21 = arith.constant dense<0.000000e+00> : vector<128xf32>
      %37 = vector.multi_reduction <add>, %27, %cst_21 [0] : vector<16x128xf32> to vector<128xf32>
      %38 = vector.shape_cast %37 : vector<128xf32> to vector<1x128xf32>
      %39 = vector.shape_cast %38 : vector<1x128xf32> to vector<1x1x128xf32>
      %40 = arith.addf %36, %39 : vector<1x1x128xf32>
      %c0_22 = arith.constant 0 : index
      %c0_23 = arith.constant 0 : index
      %c0_24 = arith.constant 0 : index
      %41 = vector.load %arg5[%c0_22, %c0_23, %c0_24] : memref<1x1x128xf32, #tpu.memory_space<vmem>>, vector<1x1x128xf32>
      tpu.vector_store %arg5[%c0_22, %c0_23, %c0_24], %40 {strides = array<i32>} : memref<1x1x128xf32, #tpu.memory_space<vmem>>, vector<1x1x128xf32>,
    } else {
    }
    return
  }
  func.func @transform_0(%arg0: i32, %arg1: i32) -> (i32, i32) {
    %c1_i32 = arith.constant 1 : i32
    %0 = arith.muli %arg0, %c1_i32 : i32
    %1 = arith.addi %0, %arg1 : i32
    %c0_i32 = arith.constant 0 : i32
    %2 = arith.minsi %1, %c0_i32 : i32
    %c0_i32_0 = arith.constant 0 : i32
    %c0_i32_1 = arith.constant 0 : i32
    return %2, %c0_i32_0 : i32, i32
  }
  func.func @transform_1(%arg0: i32, %arg1: i32) -> (i32, i32) {
    %c1_i32 = arith.constant 1 : i32
    %0 = arith.muli %arg0, %c1_i32 : i32
    %1 = arith.addi %0, %arg1 : i32
    %c0_i32 = arith.constant 0 : i32
    %2 = arith.minsi %1, %c0_i32 : i32
    %c0_i32_0 = arith.constant 0 : i32
    %c0_i32_1 = arith.constant 0 : i32
    return %2, %c0_i32_0 : i32, i32
  }
  func.func @transform_2(%arg0: i32, %arg1: i32) -> (i32, i32, i32) {
    %c0_i32 = arith.constant 0 : i32
    %c0_i32_0 = arith.constant 0 : i32
    %c0_i32_1 = arith.constant 0 : i32
    return %arg0, %c0_i32, %c0_i32_0 : i32, i32, i32
  }
  func.func @transform_3(%arg0: i32, %arg1: i32) -> (i32, i32, i32) {
    %c0_i32 = arith.constant 0 : i32
    %c0_i32_0 = arith.constant 0 : i32
    %c0_i32_1 = arith.constant 0 : i32
    return %arg0, %c0_i32, %c0_i32_0 : i32, i32, i32
  }
}

</mosaic_0001>

<llo_original>
// kernel: tpu_custom_call.1
$region0: #{tpu_custom_call.1}
  #allocation0 [shape = 'u32[]', space=smem, size = 0x4, offset = 0x4, fixed_abs, tag = 'smem constant byte address 0x4 - core index']
  #allocation1 [shape = 'u32[144,128]{1,0:T(1,128)}', space=vmem, size = 0x12000, scoped, tag = 'internal scratch']
  %s0 = inlined_call_operand.hbm [shape: f32[16,128], index: 0, kind: input, shape index: {}]
  %s1 = inlined_call_operand.hbm [shape: f32[16,128], index: 1, kind: input, shape index: {}]
  %s2 = inlined_call_operand.hbm [shape: f32[1,1,128], index: 2, kind: output, shape index: {0}]
  %s3 = inlined_call_operand.hbm [shape: f32[1,1,128], index: 3, kind: output, shape index: {1}]
  %4 = xla_tuple %s2, %s3
  %s5 = sld [smem:[#allocation0]]
  $region46: #{tpu_custom_call.1} parent=0
    _
  %s7 = ssub.s32 1, %s5
  %s8 = scalar_select 0, %s7, %s5
  $region1: #{tpu_custom_call.1} parent=0
    #allocation2 [shape = 'u8[8192]{0}', space=vmem, size = 0x2000, scoped, tag = 'input window, operand 0, single buffered']
    #allocation3 [shape = 's32[1]{0}', space=sflag, size = 0x4, scoped, tag = 'scoped memory for tpu_custom_call.1']
    #allocation4 [shape = 's32[1]{0}', space=sflag, size = 0x4, scoped, tag = 'scoped memory for tpu_custom_call.1']
    #allocation5 [shape = 'u8[8192]{0}', space=vmem, size = 0x2000, scoped, tag = 'input window, operand 1, single buffered']
    #allocation6 [shape = 's32[1]{0}', space=sflag, size = 0x4, scoped, tag = 'scoped memory for tpu_custom_call.1']
    #allocation7 [shape = 'u8[512]{0}', space=vmem, size = 0x400, scoped, tag = 'output window, operand 0, single buffered']
    #allocation8 [shape = 'u8[512]{0}', space=vmem, size = 0x400, scoped, tag = 'output window, operand 1, single buffered']
    #allocation9 [shape = 's32[1]{0}', space=sflag, size = 0x4, scoped, tag = 'scoped memory for tpu_custom_call.1']
    %9 = vsyncpa [#allocation3], 0
    %10 = vsyncpa [#allocation6], 0
    %11 = vsyncpa [#allocation4], 0
    %12 = vsyncpa [#allocation9], 0
    // Predicated region
    $region2: #{tpu_custom_call.1} parent=1 // pred_check
      _
    $region3: #{tpu_custom_call.1} parent=1 // pred_check_branch
      %14 = sbr.rel (0) target = $region5
    $region4: #{tpu_custom_call.1} parent=1 // pred_region
      %s15 = sadd.s32 0, 0
      %p16 = scmp.lt.s32.totalorder %s15, 0
      %s17 = scalar_select %p16, %s15, 0
      %s18 = smul.u32 2, %s17
      %s20 = ssub.s32 256, 256
      %21 = vsyncadd [#allocation3], %s20
      %s22 = smul.addr %s18, 128
      %s23 = scalar_lea.hbm %s0, %s22
      %s24 = sshll.u32 [#allocation2], 4
      %s25 = int_to_ptr.vmem [resolvable:$true] %s24
      %30 = dma.hbm_to_vmem [thread:$0]  %s23, 256, %s25, [#allocation3], 128, 128, 8
    $region5: #{tpu_custom_call.1} parent=1 // pred_fallthru
      _
    // Predicated region
    $region6: #{tpu_custom_call.1} parent=1 // pred_check
      _
    $region7: #{tpu_custom_call.1} parent=1 // pred_check_branch
      %32 = sbr.rel (0) target = $region9
    $region8: #{tpu_custom_call.1} parent=1 // pred_region
      %s33 = sadd.s32 0, 0
      %p34 = scmp.lt.s32.totalorder %s33, 0
      %s35 = scalar_select %p34, %s33, 0
      %s36 = smul.u32 2, %s35
      %s38 = ssub.s32 256, 256
      %39 = vsyncadd [#allocation6], %s38
      %s40 = smul.addr %s36, 128
      %s41 = scalar_lea.hbm %s1, %s40
      %s42 = sshll.u32 [#allocation5], 4
      %s43 = int_to_ptr.vmem [resolvable:$true] %s42
      %48 = dma.hbm_to_vmem [thread:$0]  %s41, 256, %s43, [#allocation6], 128, 128, 8
    $region9: #{tpu_custom_call.1} parent=1 // pred_fallthru
      _
    // Predicated region
    $region10: #{tpu_custom_call.1} parent=1 // pred_check
      _
    $region11: #{tpu_custom_call.1} parent=1 // pred_check_branch
      %50 = sbr.rel (0) target = $region13
    $region12: #{tpu_custom_call.1} parent=1 // pred_region
      %51 = dma.done [#allocation3], 256
    $region13: #{tpu_custom_call.1} parent=1 // pred_fallthru
      _
    // Predicated region
    $region14: #{tpu_custom_call.1} parent=1 // pred_check
      _
    $region15: #{tpu_custom_call.1} parent=1 // pred_check_branch
      %53 = sbr.rel (0) target = $region17
    $region16: #{tpu_custom_call.1} parent=1 // pred_region
      %54 = dma.done [#allocation6], 256
    $region17: #{tpu_custom_call.1} parent=1 // pred_fallthru
      _
    %s55 = sadd.s32 0, 0
    %p56 = scmp.lt.s32.totalorder %s55, 0
    %s57 = scalar_select %p56, %s55, 0
    %s58 = smul.u32 2, %s57
    %s59 = sadd.s32 0, 0
    %p60 = scmp.lt.s32.totalorder %s59, 0
    %s61 = scalar_select %p60, %s59, 0
    %s62 = smul.u32 2, %s61
    %p63 = scmp.eq.s32.totalorder 0, 0
    // Predicated region
    $region18: #{tpu_custom_call.1} parent=1 // pred_check
      %p64 = pneg %p63
    $region19: #{tpu_custom_call.1} parent=1 // pred_check_branch
      %66 = sbr.rel (%p64) target = $region21
    $region20: #{tpu_custom_call.1} parent=1 // pred_region
      %67 = vst [vmem:[#allocation7] sm:$0x1] 0.0
      %68 = vst [vmem:[#allocation8] sm:$0x1] 0.0
    $region21: #{tpu_custom_call.1} parent=1 // pred_fallthru
      _
    %v69 = vld [vmem:[#allocation5] sm:$0xff]
    %v70 = vld [vmem:[#allocation5 + $0x8] sm:$0xff]
    %v71 = vld [vmem:[#allocation2] sm:$0xff]
    %v72 = vld [vmem:[#allocation2 + $0x8] sm:$0xff]
    %vm73 = vcmp.ne.f32.partialorder %v69, 0.0
    %vm74 = vcmp.ne.f32.partialorder %v70, 0.0
    %v75 = vsub.f32 %v69, %v71
    %v76 = vsub.f32 %v70, %v72
    %v77 = vmul.f32 %v75, %v75
    %v78 = vmul.f32 %v76, %v76
    %s79 = sadd.s32 0, 0
    %s80 = sadd.s32 %s79, 1
    %s81 = smul.u32 %s80, 16
    %p82 = scmp.le.s32.totalorder %s81, 16
    // Predicated region
    $region22: #{tpu_custom_call.1} parent=1 // pred_check
      %p83 = pneg %p82
    $region23: #{tpu_custom_call.1} parent=1 // pred_check_branch
      %85 = sbr.rel (%p83) target = $region25
    $region24: #{tpu_custom_call.1} parent=1 // pred_region
      %v86 = vsel %vm73, 1, 0
      %v87 = vsel %vm74, 1, 0
      %v88 = vcvt.s32.f32 %v86
      %v89 = vcvt.s32.f32 %v87
      %v90 = vmul.f32 %v77, %v88
      %v91 = vmul.f32 %v78, %v89
      %v92 = vld [vmem:[#allocation7] sm:$0x1]
      %v93 = vadd.f32 %v90, %v91
      %v94 = vrot.slane %v93, 4
      %v95 = vadd.f32 %v93, %v94
      %v96 = vrot.slane %v95, 2
      %v97 = vadd.f32 %v95, %v96
      %v98 = vrot.slane %v97, 1
      %v99 = vadd.f32 %v97, %v98
      %v100 = vadd.f32 %v92, %v99
      %101 = vst [vmem:[#allocation7] sm:$0x1] %v100
      %v102 = vld [vmem:[#allocation8] sm:$0x1]
      %v103 = vadd.f32 %v88, %v89
      %v104 = vrot.slane %v103, 4
      %v105 = vadd.f32 %v103, %v104
      %v106 = vrot.slane %v105, 2
      %v107 = vadd.f32 %v105, %v106
      %v108 = vrot.slane %v107, 1
      %v109 = vadd.f32 %v107, %v108
      %v110 = vadd.f32 %v102, %v109
      %111 = vst [vmem:[#allocation8] sm:$0x1] %v110
    $region25: #{tpu_custom_call.1} parent=1 // pred_fallthru
      _
    %p112 = scmp.gt.s32.totalorder %s81, 16
    // Predicated region
    $region26: #{tpu_custom_call.1} parent=1 // pred_check
      %p113 = pneg %p112
    $region27: #{tpu_custom_call.1} parent=1 // pred_check_branch
      %115 = sbr.rel (%p113) target = $region29
    $region28: #{tpu_custom_call.1} parent=1 // pred_region
      %v116 = vlaneseq
      %v117 = vshrl.u32 %v116, 7
      %v118 = vadd.s32 %v117, 8
      %s119 = smul.u32 %s79, 16
      %v120 = vstv %s119
      %v121 = vadd.s32 %v120, %v117
      %v122 = vadd.s32 %v120, %v118
      %vm123 = vcmp.lt.s32.totalorder %v121, 16
      %vm124 = vcmp.lt.s32.totalorder %v122, 16
      %vm125 = vmand %vm73, %vm123
      %vm126 = vmand %vm74, %vm124
      %v127 = vsel %vm125, 1, 0
      %v128 = vsel %vm126, 1, 0
      %v129 = vcvt.s32.f32 %v127
      %v130 = vcvt.s32.f32 %v128
      %v131 = vsel %vm125, %v77, 0.0
      %v132 = vsel %vm126, %v78, 0.0
      %v133 = vld [vmem:[#allocation7] sm:$0x1]
      %v134 = vadd.f32 %v131, %v132
      %v135 = vrot.slane %v134, 4
      %v136 = vadd.f32 %v134, %v135
      %v137 = vrot.slane %v136, 2
      %v138 = vadd.f32 %v136, %v137
      %v139 = vrot.slane %v138, 1
      %v140 = vadd.f32 %v138, %v139
      %v141 = vadd.f32 %v133, %v140
      %142 = vst [vmem:[#allocation7] sm:$0x1] %v141
      %v143 = vld [vmem:[#allocation8] sm:$0x1]
      %v144 = vadd.f32 %v129, %v130
      %v145 = vrot.slane %v144, 4
      %v146 = vadd.f32 %v144, %v145
      %v147 = vrot.slane %v146, 2
      %v148 = vadd.f32 %v146, %v147
      %v149 = vrot.slane %v148, 1
      %v150 = vadd.f32 %v148, %v149
      %v151 = vadd.f32 %v143, %v150
      %152 = vst [vmem:[#allocation8] sm:$0x1] %v151
    $region29: #{tpu_custom_call.1} parent=1 // pred_fallthru
      _
    // Predicated region
    $region30: #{tpu_custom_call.1} parent=1 // pred_check
      _
    $region31: #{tpu_custom_call.1} parent=1 // pred_check_branch
      %154 = sbr.rel (0) target = $region33
    $region32: #{tpu_custom_call.1} parent=1 // pred_region
      %s156 = ssub.s32 16, 16
      %157 = vsyncadd [#allocation4], %s156
      %s159 = sshll.u32 [#allocation7], 4
      %s160 = int_to_ptr.vmem [resolvable:$true] %s159
      %162 = dma.vmem_to_hbm [thread:$0]  %s160, 16, %s2, [#allocation4]
    $region33: #{tpu_custom_call.1} parent=1 // pred_fallthru
      _
    // Predicated region
    $region34: #{tpu_custom_call.1} parent=1 // pred_check
      _
    $region35: #{tpu_custom_call.1} parent=1 // pred_check_branch
      %164 = sbr.rel (0) target = $region37
    $region36: #{tpu_custom_call.1} parent=1 // pred_region
      %s166 = ssub.s32 16, 16
      %167 = vsyncadd [#allocation9], %s166
      %s169 = sshll.u32 [#allocation8], 4
      %s170 = int_to_ptr.vmem [resolvable:$true] %s169
      %172 = dma.vmem_to_hbm [thread:$0]  %s170, 16, %s3, [#allocation9]
    $region37: #{tpu_custom_call.1} parent=1 // pred_fallthru
      _
    // Predicated region
    $region38: #{tpu_custom_call.1} parent=1 // pred_check
      _
    $region39: #{tpu_custom_call.1} parent=1 // pred_check_branch
      %174 = sbr.rel (0) target = $region41
    $region40: #{tpu_custom_call.1} parent=1 // pred_region
      %175 = dma.done [#allocation4], 16
    $region41: #{tpu_custom_call.1} parent=1 // pred_fallthru
      _
    // Predicated region
    $region42: #{tpu_custom_call.1} parent=1 // pred_check
      _
    $region43: #{tpu_custom_call.1} parent=1 // pred_check_branch
      %177 = sbr.rel (0) target = $region45
    $region44: #{tpu_custom_call.1} parent=1 // pred_region
      %178 = dma.done [#allocation9], 16
    $region45: #{tpu_custom_call.1} parent=1 // pred_fallthru
      _
    %179 = vsyncpa [#allocation3], 1
    %180 = vsyncpa [#allocation6], 1
    %181 = vsyncpa [#allocation4], 1
    %182 = vsyncpa [#allocation9], 1

</llo_original>
